<compile_context>
chip_gen: v5e
topology: v5e:2x2
jax: 0.10.0
libtpu: 0.0.40
codegen_flags: <defaults>
</compile_context>

<pallas_src>
import functools

import jax
import jax.numpy as jnp
from jax.experimental import pallas as pl
from jax.experimental.pallas import tpu as pltpu

EPS = 1e-5


def hacker_mlp_kernel(x_ref, w1_ref, b1_ref, w2_ref, b2_ref, w3_ref, b3_ref, o_ref):
    # x tile: (TB, D) f32 in VMEM; cast to bf16 on the VPU (free under DMA slack) so the
    # MXU sees bf16 operands with f32 accumulation.  Weights bf16, biases f32 (BN folded in).
    x = x_ref[...].astype(jnp.bfloat16)

    # Layer 1: Linear(input_dim, 64) [+ folded BN] + ReLU (+ Dropout eval=identity)
    h = jnp.dot(x, w1_ref[...], preferred_element_type=jnp.float32) + b1_ref[...]
    h = jnp.maximum(h, 0.0).astype(jnp.bfloat16)

    # Layer 2: Linear(64, 32) [+ folded BN] + ReLU (+ Dropout eval=identity)
    h = jnp.dot(h, w2_ref[...], preferred_element_type=jnp.float32) + b2_ref[...]
    h = jnp.maximum(h, 0.0).astype(jnp.bfloat16)

    # Layer 3: Linear(32, 4)
    o_ref[...] = jnp.dot(h, w3_ref[...], preferred_element_type=jnp.float32) + b3_ref[...]


def fold_params(params, compute_dtype=jnp.bfloat16):
    """Fold eval-mode BatchNorm + Linear bias into the weights, once, on the host."""
    s1 = params["g1"] * jax.lax.rsqrt(params["v1"] + EPS)          # (1, 64)
    w1f = (params["w1"] * s1).astype(compute_dtype)                 # (D, 64)
    b1f = ((params["b1"] - params["m1"]) * s1 + params["be1"]).astype(jnp.float32)

    s2 = params["g2"] * jax.lax.rsqrt(params["v2"] + EPS)           # (1, 32)
    w2f = (params["w2"] * s2).astype(compute_dtype)                 # (64, 32)
    b2f = ((params["b2"] - params["m2"]) * s2 + params["be2"]).astype(jnp.float32)

    w3f = params["w3"].astype(compute_dtype)                        # (32, 4)
    b3f = params["b3"].astype(jnp.float32)                          # (1, 4)
    return w1f, b1f, w2f, b2f, w3f, b3f


def _pick_tile(block_b, batch):
    """Tile must be exactly B or a multiple of 8 (f32 sublane rule on the (tb,4) out block)."""
    if block_b >= batch:
        return batch
    return max(8, (block_b // 8) * 8)


@functools.partial(jax.jit, static_argnames=("block_b", "vmem_limit_bytes"))
def hacker_classifier_forward(x, folded, block_b=4096, vmem_limit_bytes=48 * 1024 * 1024):
    """x: (B, input_dim) f32. folded: output of fold_params. Returns (B, 4) f32 logits.

    block_b: sweep 2048-8192 (all gens); v5e/v6e may push 8K-16K with a larger vmem limit,
    v7x should stay <= ~8192 / <= ~48 MiB.
    """
    w1f, b1f, w2f, b2f, w3f, b3f = folded
    B, D = x.shape
    tb = _pick_tile(block_b, B)
    grid = (pl.cdiv(B, tb),)

    # Resident (never re-DMA'd) full-array spec for weights / biases.
    def resident(arr):
        return pl.BlockSpec(arr.shape, lambda i: (0, 0))

    return pl.pallas_call(
        hacker_mlp_kernel,
        out_shape=jax.ShapeDtypeStruct((B, 4), jnp.float32),
        grid=grid,
        in_specs=[
            pl.BlockSpec((tb, D), lambda i: (i, 0)),   # x: f32, batch-tiled, auto-pipelined
            resident(w1f), resident(b1f),
            resident(w2f), resident(b2f),
            resident(w3f), resident(b3f),
        ],
        out_specs=pl.BlockSpec((tb, 4), lambda i: (i, 0)),
        compiler_params=pltpu.CompilerParams(
            dimension_semantics=("parallel",),          # shard batch tiles across v7x's 2 TCs
            vmem_limit_bytes=vmem_limit_bytes,          # 48 MiB: safe on v5e/v6e/v7x
        ),
    )(x, w1f, b1f, w2f, b2f, w3f, b3f)


def init_params(key, input_dim):
    ks = jax.random.split(key, 6)

    def lin(k, fan_in, fan_out):
        # PyTorch nn.Linear default-ish init (uniform +- 1/sqrt(fan_in)), stored as (in, out).
        bound = 1.0 / jnp.sqrt(fan_in)
        kw, kb = jax.random.split(k)
        w = jax.random.uniform(kw, (fan_in, fan_out), jnp.float32, -bound, bound)
        b = jax.random.uniform(kb, (1, fan_out), jnp.float32, -bound, bound)
        return w, b

    w1, b1 = lin(ks[0], input_dim, 64)
    w2, b2 = lin(ks[1], 64, 32)
    w3, b3 = lin(ks[2], 32, 4)

    # BatchNorm1d params / running stats (deterministic, non-trivial)
    g1 = 1.0 + 0.1 * jax.random.normal(ks[3], (1, 64), jnp.float32)
    be1 = 0.1 * jax.random.normal(ks[4], (1, 64), jnp.float32)
    m1 = 0.05 * jax.random.normal(ks[5], (1, 64), jnp.float32)
    v1 = 1.0 + 0.1 * jnp.abs(jax.random.normal(jax.random.fold_in(key, 10), (1, 64), jnp.float32))

    g2 = 1.0 + 0.1 * jax.random.normal(jax.random.fold_in(key, 11), (1, 32), jnp.float32)
    be2 = 0.1 * jax.random.normal(jax.random.fold_in(key, 12), (1, 32), jnp.float32)
    m2 = 0.05 * jax.random.normal(jax.random.fold_in(key, 13), (1, 32), jnp.float32)
    v2 = 1.0 + 0.1 * jnp.abs(jax.random.normal(jax.random.fold_in(key, 14), (1, 32), jnp.float32))

    return dict(w1=w1, b1=b1, g1=g1, be1=be1, m1=m1, v1=v1,
                w2=w2, b2=b2, g2=g2, be2=be2, m2=m2, v2=v2,
                w3=w3, b3=b3)


def reference_forward_f32(x, p):
    """Original module semantics in full f32 (unfolded BN, eval mode)."""
    h = x @ p["w1"] + p["b1"]
    h = (h - p["m1"]) / jnp.sqrt(p["v1"] + EPS) * p["g1"] + p["be1"]
    h = jnp.maximum(h, 0.0)
    h = h @ p["w2"] + p["b2"]
    h = (h - p["m2"]) / jnp.sqrt(p["v2"] + EPS) * p["g2"] + p["be2"]
    h = jnp.maximum(h, 0.0)
    return h @ p["w3"] + p["b3"]


def reference_forward_folded(x, folded):
    """Same numerics as the kernel (bf16 operands, f32 accumulation, folded BN)."""
    w1f, b1f, w2f, b2f, w3f, b3f = folded
    h = jnp.dot(x.astype(jnp.bfloat16), w1f, preferred_element_type=jnp.float32) + b1f
    h = jnp.maximum(h, 0.0).astype(jnp.bfloat16)
    h = jnp.dot(h, w2f, preferred_element_type=jnp.float32) + b2f
    h = jnp.maximum(h, 0.0).astype(jnp.bfloat16)
    return jnp.dot(h, w3f, preferred_element_type=jnp.float32) + b3f


if __name__ == "__main__":
    key = jax.random.PRNGKey(0)
    k_x, k_p = jax.random.split(key)

    B, INPUT_DIM = 256, 32
    x = jax.random.normal(k_x, (B, INPUT_DIM), jnp.float32)
    params = init_params(k_p, INPUT_DIM)
    folded = fold_params(params)

    # block_b=128 -> 2 grid steps even at this small demo batch (exercises the pipeline).
    # For real workloads leave the default block_b=4096 (and sweep 2048-8192).
    out = hacker_classifier_forward(x, folded, block_b=128)
    out = jax.block_until_ready(out)
    assert out.shape == (B, 4)

    # Tight check against a reference with identical numerics (bf16 operands, f32 accum).
    ref_folded = reference_forward_folded(x, folded)
    assert jnp.allclose(out, ref_folded, atol=1e-3, rtol=1e-3), "mismatch vs bf16-matched reference"

    # Looser check against the original full-f32 module semantics (bf16 rounding tolerance).
    ref_f32 = reference_forward_f32(x, params)
    assert jnp.allclose(out, ref_f32, atol=5e-2, rtol=5e-2), "mismatch vs f32 module reference"

    print("KERNEL_OK")
</pallas_src>

<mosaic_0001>
module attributes {stable_mosaic.version = 11 : i64} {
  func.func @hacker_mlp_kernel(%arg0: i32, %arg1: memref<128x32xf32, #tpu.memory_space<vmem>>, %arg2: memref<32x64xbf16, #tpu.memory_space<vmem>>, %arg3: memref<1x64xf32, #tpu.memory_space<vmem>>, %arg4: memref<64x32xbf16, #tpu.memory_space<vmem>>, %arg5: memref<1x32xf32, #tpu.memory_space<vmem>>, %arg6: memref<32x4xbf16, #tpu.memory_space<vmem>>, %arg7: memref<1x4xf32, #tpu.memory_space<vmem>>, %arg8: memref<128x4xf32, #tpu.memory_space<vmem>>) attributes {dimension_semantics = [#tpu.dimension_semantics<parallel>], iteration_bounds = array<i64: 2>, scalar_prefetch = 0 : i64, scratch_operands = 0 : i64, tpu.core_type = #tpu.core_type<tc>, window_params = [{transform_indices = @transform_0, window_bounds = array<i64: 128, 32>}, {pipeline_mode = #tpu.pipeline_mode<synchronous>, transform_indices = @transform_1, window_bounds = array<i64: 32, 64>}, {pipeline_mode = #tpu.pipeline_mode<synchronous>, transform_indices = @transform_2, window_bounds = array<i64: 1, 64>}, {pipeline_mode = #tpu.pipeline_mode<synchronous>, transform_indices = @transform_3, window_bounds = array<i64: 64, 32>}, {pipeline_mode = #tpu.pipeline_mode<synchronous>, transform_indices = @transform_4, window_bounds = array<i64: 1, 32>}, {pipeline_mode = #tpu.pipeline_mode<synchronous>, transform_indices = @transform_5, window_bounds = array<i64: 32, 4>}, {pipeline_mode = #tpu.pipeline_mode<synchronous>, transform_indices = @transform_6, window_bounds = array<i64: 1, 4>}, {transform_indices = @transform_7, window_bounds = array<i64: 128, 4>}]} {
    %c0 = arith.constant 0 : index
    %c0_0 = arith.constant 0 : index
    %0 = vector.load %arg1[%c0, %c0_0] : memref<128x32xf32, #tpu.memory_space<vmem>>, vector<128x32xf32>
    %1 = arith.truncf %0 : vector<128x32xf32> to vector<128x32xbf16>
    %c0_1 = arith.constant 0 : index
    %c0_2 = arith.constant 0 : index
    %2 = vector.load %arg2[%c0_1, %c0_2] : memref<32x64xbf16, #tpu.memory_space<vmem>>, vector<32x64xbf16>
    %cst = arith.constant dense<0.000000e+00> : vector<128x64xf32>
    %3 = tpu.matmul %1, %2, %cst {dimension_numbers = #tpu.dot_dimension_numbers<[1], [0], [0], [1], [0, 0, 1, 1], [], []>} : vector<128x32xbf16>, vector<32x64xbf16>, vector<128x64xf32> -> vector<128x64xf32>
    %c0_3 = arith.constant 0 : index
    %c0_4 = arith.constant 0 : index
    %4 = vector.load %arg3[%c0_3, %c0_4] : memref<1x64xf32, #tpu.memory_space<vmem>>, vector<1x64xf32>
    %5 = vector.broadcast %4 : vector<1x64xf32> to vector<128x64xf32>
    %6 = arith.addf %3, %5 : vector<128x64xf32>
    %cst_5 = arith.constant 0.000000e+00 : f32
    %7 = vector.broadcast %cst_5 : f32 to vector<128x64xf32>
    %8 = arith.maximumf %6, %7 : vector<128x64xf32>
    %9 = arith.truncf %8 : vector<128x64xf32> to vector<128x64xbf16>
    %c0_6 = arith.constant 0 : index
    %c0_7 = arith.constant 0 : index
    %10 = vector.load %arg4[%c0_6, %c0_7] : memref<64x32xbf16, #tpu.memory_space<vmem>>, vector<64x32xbf16>
    %cst_8 = arith.constant dense<0.000000e+00> : vector<128x32xf32>
    %11 = tpu.matmul %9, %10, %cst_8 {dimension_numbers = #tpu.dot_dimension_numbers<[1], [0], [0], [1], [0, 0, 1, 1], [], []>} : vector<128x64xbf16>, vector<64x32xbf16>, vector<128x32xf32> -> vector<128x32xf32>
    %c0_9 = arith.constant 0 : index
    %c0_10 = arith.constant 0 : index
    %12 = vector.load %arg5[%c0_9, %c0_10] : memref<1x32xf32, #tpu.memory_space<vmem>>, vector<1x32xf32>
    %13 = vector.broadcast %12 : vector<1x32xf32> to vector<128x32xf32>
    %14 = arith.addf %11, %13 : vector<128x32xf32>
    %cst_11 = arith.constant 0.000000e+00 : f32
    %15 = vector.broadcast %cst_11 : f32 to vector<128x32xf32>
    %16 = arith.maximumf %14, %15 : vector<128x32xf32>
    %17 = arith.truncf %16 : vector<128x32xf32> to vector<128x32xbf16>
    %c0_12 = arith.constant 0 : index
    %c0_13 = arith.constant 0 : index
    %18 = vector.load %arg6[%c0_12, %c0_13] : memref<32x4xbf16, #tpu.memory_space<vmem>>, vector<32x4xbf16>
    %cst_14 = arith.constant dense<0.000000e+00> : vector<128x4xf32>
    %19 = tpu.matmul %17, %18, %cst_14 {dimension_numbers = #tpu.dot_dimension_numbers<[1], [0], [0], [1], [0, 0, 1, 1], [], []>} : vector<128x32xbf16>, vector<32x4xbf16>, vector<128x4xf32> -> vector<128x4xf32>
    %c0_15 = arith.constant 0 : index
    %c0_16 = arith.constant 0 : index
    %20 = vector.load %arg7[%c0_15, %c0_16] : memref<1x4xf32, #tpu.memory_space<vmem>>, vector<1x4xf32>
    %21 = vector.broadcast %20 : vector<1x4xf32> to vector<128x4xf32>
    %22 = arith.addf %19, %21 : vector<128x4xf32>
    %c0_17 = arith.constant 0 : index
    %c0_18 = arith.constant 0 : index
    %23 = vector.load %arg8[%c0_17, %c0_18] : memref<128x4xf32, #tpu.memory_space<vmem>>, vector<128x4xf32>
    tpu.vector_store %arg8[%c0_17, %c0_18], %22 {strides = array<i32>} : memref<128x4xf32, #tpu.memory_space<vmem>>, vector<128x4xf32>,
    return
  }
  func.func @transform_0(%arg0: i32) -> (i32, i32) {
    %c0_i32 = arith.constant 0 : i32
    %c0_i32_0 = arith.constant 0 : i32
    return %arg0, %c0_i32 : i32, i32
  }
  func.func @transform_1(%arg0: i32) -> (i32, i32) {
    %c0_i32 = arith.constant 0 : i32
    %c0_i32_0 = arith.constant 0 : i32
    %c0_i32_1 = arith.constant 0 : i32
    return %c0_i32, %c0_i32_0 : i32, i32
  }
  func.func @transform_2(%arg0: i32) -> (i32, i32) {
    %c0_i32 = arith.constant 0 : i32
    %c0_i32_0 = arith.constant 0 : i32
    %c0_i32_1 = arith.constant 0 : i32
    return %c0_i32, %c0_i32_0 : i32, i32
  }
  func.func @transform_3(%arg0: i32) -> (i32, i32) {
    %c0_i32 = arith.constant 0 : i32
    %c0_i32_0 = arith.constant 0 : i32
    %c0_i32_1 = arith.constant 0 : i32
    return %c0_i32, %c0_i32_0 : i32, i32
  }
  func.func @transform_4(%arg0: i32) -> (i32, i32) {
    %c0_i32 = arith.constant 0 : i32
    %c0_i32_0 = arith.constant 0 : i32
    %c0_i32_1 = arith.constant 0 : i32
    return %c0_i32, %c0_i32_0 : i32, i32
  }
  func.func @transform_5(%arg0: i32) -> (i32, i32) {
    %c0_i32 = arith.constant 0 : i32
    %c0_i32_0 = arith.constant 0 : i32
    %c0_i32_1 = arith.constant 0 : i32
    return %c0_i32, %c0_i32_0 : i32, i32
  }
  func.func @transform_6(%arg0: i32) -> (i32, i32) {
    %c0_i32 = arith.constant 0 : i32
    %c0_i32_0 = arith.constant 0 : i32
    %c0_i32_1 = arith.constant 0 : i32
    return %c0_i32, %c0_i32_0 : i32, i32
  }
  func.func @transform_7(%arg0: i32) -> (i32, i32) {
    %c0_i32 = arith.constant 0 : i32
    %c0_i32_0 = arith.constant 0 : i32
    return %arg0, %c0_i32 : i32, i32
  }
}

</mosaic_0001>

<llo_original>
// kernel: hacker_classifier_forward.1
$region0: #{hacker_classifier_forward.1}
  #allocation0 [shape = 'u32[]', space=smem, size = 0x4, offset = 0x4, fixed_abs, tag = 'smem constant byte address 0x4 - core index']
  #allocation1 [shape = 'u32[72,128]{1,0:T(1,128)}', space=vmem, size = 0x9000, scoped, tag = 'internal scratch']
  %s0 = inlined_call_operand.vmem [shape: f32[256,32], index: 0, kind: input, shape index: {}]
  %s1 = inlined_call_operand.vmem [shape: bf16[32,64], index: 1, kind: input, shape index: {}]
  %s2 = inlined_call_operand.vmem [shape: f32[1,64], index: 2, kind: input, shape index: {}]
  %s3 = inlined_call_operand.vmem [shape: bf16[64,32], index: 3, kind: input, shape index: {}]
  %s4 = inlined_call_operand.vmem [shape: f32[1,32], index: 4, kind: input, shape index: {}]
  %s5 = inlined_call_operand.vmem [shape: bf16[32,4], index: 5, kind: input, shape index: {}]
  %s6 = inlined_call_operand.vmem [shape: f32[1,4], index: 6, kind: input, shape index: {}]
  %s7 = inlined_call_operand.vmem [shape: f32[256,4], index: 7, kind: output, shape index: {}]
  %s8 = sld [smem:[#allocation0]]
  $region61: #{hacker_classifier_forward.1} parent=0
    _
  %s10 = ssub.s32 1, %s8
  %s11 = scalar_select 0, %s10, %s8
  loop: start=0, step=1, limit=4
  $region2: #{hacker_classifier_forward.1} parent=0 // loop_pre_header
    _
  $region3: #{hacker_classifier_forward.1} parent=0 // loop_header
    %s13 = sphi 0, %s17
    %p14 = scmp.ge.s32.totalorder %s13, 4
    %s23 = sphi 0, %s25
    %s26 = sphi 0, %s23
    %s27 = sphi 0, %s26
    %s43 = sphi 0, %s27
    %s47 = sphi 0, %s47
    %s49 = sphi 0, %s47
    %s50 = sphi 0, %s49
    %s64 = sphi 0, %s50
    %s68 = sphi 0, %s68
    %s70 = sphi 0, %s68
    %s71 = sphi 0, %s70
    %s85 = sphi 0, %s71
    %s89 = sphi 0, %s89
    %s91 = sphi 0, %s89
    %s92 = sphi 0, %s91
    %s106 = sphi 0, %s92
    %s110 = sphi 0, %s110
    %s112 = sphi 0, %s110
    %s113 = sphi 0, %s112
    %s127 = sphi 0, %s113
    %s131 = sphi 0, %s131
    %s133 = sphi 0, %s131
    %s134 = sphi 0, %s133
    %s148 = sphi 0, %s134
    %s152 = sphi 0, %s152
    %s154 = sphi 0, %s152
    %s155 = sphi 0, %s154
    %s169 = sphi 0, %s155
    %s175 = sphi 0, %s177
    %s178 = sphi 0, %s175
    %s179 = sphi 0, %s178
    %s195 = sphi 0, %s179
  $region4: #{hacker_classifier_forward.1} parent=0 // loop_header_branch
    %16 = sbr.rel (%p14) target = $region8
  $region5: #{hacker_classifier_forward.1} parent=0 // loop_body
    %s18 = ssub.s32 %s13, 1
    %s19 = ssub.s32 %s13, 2
    %s20 = sadd.s32 %s13, 1
    %s21 = ssub.s32 %s13, %s20
    %p22 = scmp.eq.s32.totalorder %s21, 0
    %s24 = sadd.s32 %s23, 1
    %s25 = scalar_select %p22, %s23, %s24
    %p28 = pneg %p22
    %p29 = scmp.eq.s32.totalorder %s13, 1
    %p30 = por %p28, %p29
    %p31 = scmp.ne.s32.totalorder %s23, %s26
    %p32 = scmp.eq.s32.totalorder %s13, 0
    %p33 = por %p31, %p32
    %p34 = scmp.ne.s32.totalorder %s23, %s26
    %p35 = scmp.eq.s32.totalorder %s18, 1
    %p36 = por %p34, %p35
    %p37 = scmp.ne.s32.totalorder %s26, %s27
    %p38 = scmp.eq.s32.totalorder %s18, 0
    %p39 = por %p37, %p38
    %p40 = scmp.ne.s32.totalorder %s26, %s27
    %p41 = scmp.eq.s32.totalorder %s19, 1
    %p42 = por %p40, %p41
    %p44 = scmp.ne.s32.totalorder %s27, %s43
    %p45 = scmp.eq.s32.totalorder %s19, 0
    %p46 = por %p44, %p45
    %s48 = sadd.s32 %s47, 1
    %p51 = scmp.eq.s32.totalorder %s13, 1
    %p52 = scmp.ne.s32.totalorder %s47, %s49
    %p53 = scmp.eq.s32.totalorder %s13, 0
    %p54 = por %p52, %p53
    %p55 = scmp.ne.s32.totalorder %s47, %s49
    %p56 = scmp.eq.s32.totalorder %s18, 1
    %p57 = por %p55, %p56
    %p58 = scmp.ne.s32.totalorder %s49, %s50
    %p59 = scmp.eq.s32.totalorder %s18, 0
    %p60 = por %p58, %p59
    %p61 = scmp.ne.s32.totalorder %s49, %s50
    %p62 = scmp.eq.s32.totalorder %s19, 1
    %p63 = por %p61, %p62
    %p65 = scmp.ne.s32.totalorder %s50, %s64
    %p66 = scmp.eq.s32.totalorder %s19, 0
    %p67 = por %p65, %p66
    %s69 = sadd.s32 %s68, 1
    %p72 = scmp.eq.s32.totalorder %s13, 1
    %p73 = scmp.ne.s32.totalorder %s68, %s70
    %p74 = scmp.eq.s32.totalorder %s13, 0
    %p75 = por %p73, %p74
    %p76 = scmp.ne.s32.totalorder %s68, %s70
    %p77 = scmp.eq.s32.totalorder %s18, 1
    %p78 = por %p76, %p77
    %p79 = scmp.ne.s32.totalorder %s70, %s71
    %p80 = scmp.eq.s32.totalorder %s18, 0
    %p81 = por %p79, %p80
    %p82 = scmp.ne.s32.totalorder %s70, %s71
    %p83 = scmp.eq.s32.totalorder %s19, 1
    %p84 = por %p82, %p83
    %p86 = scmp.ne.s32.totalorder %s71, %s85
    %p87 = scmp.eq.s32.totalorder %s19, 0
    %p88 = por %p86, %p87
    %s90 = sadd.s32 %s89, 1
    %p93 = scmp.eq.s32.totalorder %s13, 1
    %p94 = scmp.ne.s32.totalorder %s89, %s91
    %p95 = scmp.eq.s32.totalorder %s13, 0
    %p96 = por %p94, %p95
    %p97 = scmp.ne.s32.totalorder %s89, %s91
    %p98 = scmp.eq.s32.totalorder %s18, 1
    %p99 = por %p97, %p98
    %p100 = scmp.ne.s32.totalorder %s91, %s92
    %p101 = scmp.eq.s32.totalorder %s18, 0
    %p102 = por %p100, %p101
    %p103 = scmp.ne.s32.totalorder %s91, %s92
    %p104 = scmp.eq.s32.totalorder %s19, 1
    %p105 = por %p103, %p104
    %p107 = scmp.ne.s32.totalorder %s92, %s106
    %p108 = scmp.eq.s32.totalorder %s19, 0
    %p109 = por %p107, %p108
    %s111 = sadd.s32 %s110, 1
    %p114 = scmp.eq.s32.totalorder %s13, 1
    %p115 = scmp.ne.s32.totalorder %s110, %s112
    %p116 = scmp.eq.s32.totalorder %s13, 0
    %p117 = por %p115, %p116
    %p118 = scmp.ne.s32.totalorder %s110, %s112
    %p119 = scmp.eq.s32.totalorder %s18, 1
    %p120 = por %p118, %p119
    %p121 = scmp.ne.s32.totalorder %s112, %s113
    %p122 = scmp.eq.s32.totalorder %s18, 0
    %p123 = por %p121, %p122
    %p124 = scmp.ne.s32.totalorder %s112, %s113
    %p125 = scmp.eq.s32.totalorder %s19, 1
    %p126 = por %p124, %p125
    %p128 = scmp.ne.s32.totalorder %s113, %s127
    %p129 = scmp.eq.s32.totalorder %s19, 0
    %p130 = por %p128, %p129
    %s132 = sadd.s32 %s131, 1
    %p135 = scmp.eq.s32.totalorder %s13, 1
    %p136 = scmp.ne.s32.totalorder %s131, %s133
    %p137 = scmp.eq.s32.totalorder %s13, 0
    %p138 = por %p136, %p137
    %p139 = scmp.ne.s32.totalorder %s131, %s133
    %p140 = scmp.eq.s32.totalorder %s18, 1
    %p141 = por %p139, %p140
    %p142 = scmp.ne.s32.totalorder %s133, %s134
    %p143 = scmp.eq.s32.totalorder %s18, 0
    %p144 = por %p142, %p143
    %p145 = scmp.ne.s32.totalorder %s133, %s134
    %p146 = scmp.eq.s32.totalorder %s19, 1
    %p147 = por %p145, %p146
    %p149 = scmp.ne.s32.totalorder %s134, %s148
    %p150 = scmp.eq.s32.totalorder %s19, 0
    %p151 = por %p149, %p150
    %s153 = sadd.s32 %s152, 1
    %p156 = scmp.eq.s32.totalorder %s13, 1
    %p157 = scmp.ne.s32.totalorder %s152, %s154
    %p158 = scmp.eq.s32.totalorder %s13, 0
    %p159 = por %p157, %p158
    %p160 = scmp.ne.s32.totalorder %s152, %s154
    %p161 = scmp.eq.s32.totalorder %s18, 1
    %p162 = por %p160, %p161
    %p163 = scmp.ne.s32.totalorder %s154, %s155
    %p164 = scmp.eq.s32.totalorder %s18, 0
    %p165 = por %p163, %p164
    %p166 = scmp.ne.s32.totalorder %s154, %s155
    %p167 = scmp.eq.s32.totalorder %s19, 1
    %p168 = por %p166, %p167
    %p170 = scmp.ne.s32.totalorder %s155, %s169
    %p171 = scmp.eq.s32.totalorder %s19, 0
    %p172 = por %p170, %p171
    %s173 = ssub.s32 %s13, %s20
    %p174 = scmp.eq.s32.totalorder %s173, 0
    %s176 = sadd.s32 %s175, 1
    %s177 = scalar_select %p174, %s175, %s176
    %p180 = pneg %p174
    %p181 = scmp.eq.s32.totalorder %s13, 1
    %p182 = por %p180, %p181
    %p183 = scmp.ne.s32.totalorder %s175, %s178
    %p184 = scmp.eq.s32.totalorder %s13, 0
    %p185 = por %p183, %p184
    %p186 = scmp.ne.s32.totalorder %s175, %s178
    %p187 = scmp.eq.s32.totalorder %s18, 1
    %p188 = por %p186, %p187
    %p189 = scmp.ne.s32.totalorder %s178, %s179
    %p190 = scmp.eq.s32.totalorder %s18, 0
    %p191 = por %p189, %p190
    %p192 = scmp.ne.s32.totalorder %s178, %s179
    %p193 = scmp.eq.s32.totalorder %s19, 1
    %p194 = por %p192, %p193
    %p196 = scmp.ne.s32.totalorder %s179, %s195
    %p197 = scmp.eq.s32.totalorder %s19, 0
    %p198 = por %p196, %p197
    %p199 = scmp.le.s32.totalorder 1, %s13
    %p200 = scmp.lt.s32.totalorder %s13, 3
    %p201 = pnand %p199, %p200
    %p202 = pneg %p201
    // Predicated region
    $region9: #{hacker_classifier_forward.1} parent=5 // pred_check
      _
    $region10: #{hacker_classifier_forward.1} parent=5 // pred_check_branch
      %204 = sbr.rel (%p201) target = $region12
    $region11: #{hacker_classifier_forward.1} parent=5 // pred_region
      %s205 = ssub.s32 %s13, 1
      // Predicated region
      $region13: #{hacker_classifier_forward.1} parent=11 // pred_check
        %p206 = pneg %p60
      $region14: #{hacker_classifier_forward.1} parent=11 // pred_check_branch
        %208 = sbr.rel (%p206) target = $region16
      $region15: #{hacker_classifier_forward.1} parent=11 // pred_region
        _
      $region16: #{hacker_classifier_forward.1} parent=11 // pred_fallthru
        _
      // Predicated region
      $region17: #{hacker_classifier_forward.1} parent=11 // pred_check
        %p209 = pneg %p81
      $region18: #{hacker_classifier_forward.1} parent=11 // pred_check_branch
        %211 = sbr.rel (%p209) target = $region20
      $region19: #{hacker_classifier_forward.1} parent=11 // pred_region
        _
      $region20: #{hacker_classifier_forward.1} parent=11 // pred_fallthru
        _
      // Predicated region
      $region21: #{hacker_classifier_forward.1} parent=11 // pred_check
        %p212 = pneg %p102
      $region22: #{hacker_classifier_forward.1} parent=11 // pred_check_branch
        %214 = sbr.rel (%p212) target = $region24
      $region23: #{hacker_classifier_forward.1} parent=11 // pred_region
        _
      $region24: #{hacker_classifier_forward.1} parent=11 // pred_fallthru
        _
      // Predicated region
      $region25: #{hacker_classifier_forward.1} parent=11 // pred_check
        %p215 = pneg %p123
      $region26: #{hacker_classifier_forward.1} parent=11 // pred_check_branch
        %217 = sbr.rel (%p215) target = $region28
      $region27: #{hacker_classifier_forward.1} parent=11 // pred_region
        _
      $region28: #{hacker_classifier_forward.1} parent=11 // pred_fallthru
        _
      // Predicated region
      $region29: #{hacker_classifier_forward.1} parent=11 // pred_check
        %p218 = pneg %p144
      $region30: #{hacker_classifier_forward.1} parent=11 // pred_check_branch
        %220 = sbr.rel (%p218) target = $region32
      $region31: #{hacker_classifier_forward.1} parent=11 // pred_region
        _
      $region32: #{hacker_classifier_forward.1} parent=11 // pred_fallthru
        _
      // Predicated region
      $region33: #{hacker_classifier_forward.1} parent=11 // pred_check
        %p221 = pneg %p165
      $region34: #{hacker_classifier_forward.1} parent=11 // pred_check_branch
        %223 = sbr.rel (%p221) target = $region36
      $region35: #{hacker_classifier_forward.1} parent=11 // pred_region
        _
      $region36: #{hacker_classifier_forward.1} parent=11 // pred_fallthru
        _
    $region12: #{hacker_classifier_forward.1} parent=5 // pred_fallthru
      _
    %p224 = scmp.lt.s32.totalorder %s13, 2
    // Predicated region
    $region37: #{hacker_classifier_forward.1} parent=5 // pred_check
      %p225 = pneg %p224
    $region38: #{hacker_classifier_forward.1} parent=5 // pred_check_branch
      %227 = sbr.rel (%p225) target = $region40
    $region39: #{hacker_classifier_forward.1} parent=5 // pred_region
      // Predicated region
      $region41: #{hacker_classifier_forward.1} parent=39 // pred_check
        %p228 = pneg %p33
      $region42: #{hacker_classifier_forward.1} parent=39 // pred_check_branch
        %230 = sbr.rel (%p228) target = $region44
      $region43: #{hacker_classifier_forward.1} parent=39 // pred_region
        %s231 = smul.u32 16, %s13
        %p232 = scmp.lt.s32.totalorder %s231, 31
        %s233 = scalar_select %p232, %s231, 31
        %s234 = smul.addr %s233, 8
        %s235 = scalar_lea.vmem %s0, %s234
        %s236 = smul.u32 16, %s13
      $region44: #{hacker_classifier_forward.1} parent=39 // pred_fallthru
        _
    $region40: #{hacker_classifier_forward.1} parent=5 // pred_fallthru
      _
    %p237 = scmp.le.s32.totalorder 1, %s13
    %p238 = scmp.lt.s32.totalorder %s13, 3
    %p239 = pnand %p237, %p238
    %p240 = pneg %p239
    // Predicated region
    $region45: #{hacker_classifier_forward.1} parent=5 // pred_check
      _
    $region46: #{hacker_classifier_forward.1} parent=5 // pred_check_branch
      %242 = sbr.rel (%p239) target = $region48
    $region47: #{hacker_classifier_forward.1} parent=5 // pred_region
      %s243 = ssub.s32 %s13, 1
      %s244 = smul.u32 16, %s18
      %p245 = scmp.lt.s32.totalorder %s244, 31
      %s246 = scalar_select %p245, %s244, 31
      %s247 = smul.addr %s246, 8
      %s248 = scalar_lea.vmem %s0, %s247
      %p249 = pneg %p39
      %p250 = pneg %p36
      %p251 = pneg %p60
      %p252 = pneg %p57
      %p253 = pneg %p81
      %p254 = pneg %p78
      %p255 = pneg %p102
      %p256 = pneg %p99
      %p257 = pneg %p123
      %p258 = pneg %p120
      %p259 = pneg %p144
      %p260 = pneg %p141
      %p261 = pneg %p165
      %p262 = pneg %p162
      %p263 = pneg %p191
      %p264 = pneg %p188
      %s265 = smul.u32 16, %s18
      %p266 = scmp.lt.s32.totalorder %s265, 31
      %s267 = scalar_select %p266, %s265, 31
      %s268 = smul.addr %s267, 8
      %s269 = scalar_lea.vmem %s7, %s268
      %s270 = smul.u32 16, %s18
      %p271 = scmp.lt.s32.totalorder %s270, 31
      %s272 = scalar_select %p271, %s270, 31
      %s273 = smul.addr %s272, 8
      %s274 = scalar_lea.vmem %s0, %s273
      %s275 = smul.u32 16, %s18
      %s276 = smul.u32 16, %s18
      %p277 = scmp.lt.s32.totalorder %s276, 31
      %s278 = scalar_select %p277, %s276, 31
      %s279 = smul.addr %s278, 8
      %s280 = scalar_lea.vmem %s7, %s279
      %s281 = smul.u32 16, %s18
      %v283 = vld [vmem:[%s274] sm:$0xff]
      %v284 = vld [vmem:[%s274 + $0x8] sm:$0xff]
      %v285 = vld [vmem:[%s274 + $0x10] sm:$0xff]
      %v286 = vld [vmem:[%s274 + $0x18] sm:$0xff]
      %v287 = vld [vmem:[%s274 + $0x20] sm:$0xff]
      %v288 = vld [vmem:[%s274 + $0x28] sm:$0xff]
      %v289 = vld [vmem:[%s274 + $0x30] sm:$0xff]
      %v290 = vld [vmem:[%s274 + $0x38] sm:$0xff]
      %v291 = vld [vmem:[%s274 + $0x40] sm:$0xff]
      %v292 = vld [vmem:[%s274 + $0x48] sm:$0xff]
      %v293 = vld [vmem:[%s274 + $0x50] sm:$0xff]
      %v294 = vld [vmem:[%s274 + $0x58] sm:$0xff]
      %v295 = vld [vmem:[%s274 + $0x60] sm:$0xff]
      %v296 = vld [vmem:[%s274 + $0x68] sm:$0xff]
      %v297 = vld [vmem:[%s274 + $0x70] sm:$0xff]
      %v298 = vld [vmem:[%s274 + $0x78] sm:$0xff]
      %v299 = vpack.c.bf16 %v284, %v283
      %v300 = vpack.c.bf16 %v286, %v285
      %v301 = vpack.c.bf16 %v288, %v287
      %v302 = vpack.c.bf16 %v290, %v289
      %v303 = vpack.c.bf16 %v292, %v291
      %v304 = vpack.c.bf16 %v294, %v293
      %v305 = vpack.c.bf16 %v296, %v295
      %v306 = vpack.c.bf16 %v298, %v297
      %v307 = vld [vmem:[%s1] sm:$0xf]
      %v308 = vld [vmem:[%s1 + $0x4] sm:$0xf]
      %v309 = vld [vmem:[%s1 + $0x8] sm:$0xf]
      %v310 = vld [vmem:[%s1 + $0xc] sm:$0xf]
      %v311 = vld [vmem:[%s2] sm:$0x1]
      %v313 = vperm.slane %v311, 0
      %v319 = vunpack.c.l.b16 %v307
      %v320 = vunpack.c.l.b16 %v308
      %v321 = vunpack.c.l.b16 %v309
      %v322 = vunpack.c.l.b16 %v310
      %v323 = vpack.c.b16 %v320, %v319
      %v324 = vpack.c.b16 %v322, %v321
      %vm327 = vcmask 261120
      %v329 = vsel %vm327, %v299, 0
      %v332 = vsel %vm327, %v300, 0
      %v335 = vsel %vm327, %v301, 0
      %v338 = vsel %vm327, %v302, 0
      %v341 = vsel %vm327, %v303, 0
      %v344 = vsel %vm327, %v304, 0
      %v347 = vsel %vm327, %v305, 0
      %v350 = vsel %vm327, %v306, 0
      %352 = vmatpush.bf16.msra.mxu0 0
      %353 = vmatpush.bf16.msra.mxu0 0
      %354 = vmatpush.bf16.msra.mxu0 0
      %355 = vmatpush.bf16.msra.mxu0 0
      %356 = vmatpush.bf16.msra.mxu0 0
      %357 = vmatpush.bf16.msra.mxu0 0
      %358 = vmatpush.bf16.msra.mxu0 %v324
      %359 = vmatpush.bf16.msra.mxu0 %v323
      %360 = vmatmul.bf16.gmra.mxu0 %v329
      %v361 = vpop.f32.mrf.mxu0
      %v362 = vadd.f32 %v313, %v361
      %v363 = vpop.f32.mrf.mxu0
      %v364 = vadd.f32 %v313, %v363
      %365 = vmatmul.bf16.gmra.mxu0 %v332
      %v366 = vpop.f32.mrf.mxu0
      %v367 = vadd.f32 %v313, %v366
      %v368 = vpop.f32.mrf.mxu0
      %v369 = vadd.f32 %v313, %v368
      %370 = vmatmul.bf16.gmra.mxu0 %v335
      %v371 = vpop.f32.mrf.mxu0
      %v372 = vadd.f32 %v313, %v371
      %v373 = vpop.f32.mrf.mxu0
      %v374 = vadd.f32 %v313, %v373
      %375 = vmatmul.bf16.gmra.mxu0 %v338
      %v376 = vpop.f32.mrf.mxu0
      %v377 = vadd.f32 %v313, %v376
      %v378 = vpop.f32.mrf.mxu0
      %v379 = vadd.f32 %v313, %v378
      %380 = vmatmul.bf16.gmra.mxu0 %v341
      %v381 = vpop.f32.mrf.mxu0
      %v382 = vadd.f32 %v313, %v381
      %v383 = vpop.f32.mrf.mxu0
      %v384 = vadd.f32 %v313, %v383
      %385 = vmatmul.bf16.gmra.mxu0 %v344
      %v386 = vpop.f32.mrf.mxu0
      %v387 = vadd.f32 %v313, %v386
      %v388 = vpop.f32.mrf.mxu0
      %v389 = vadd.f32 %v313, %v388
      %390 = vmatmul.bf16.gmra.mxu0 %v347
      %v391 = vpop.f32.mrf.mxu0
      %v392 = vadd.f32 %v313, %v391
      %v393 = vpop.f32.mrf.mxu0
      %v394 = vadd.f32 %v313, %v393
      %395 = vmatmul.bf16.gmra.mxu0 %v350
      %v396 = vpop.f32.mrf.mxu0
      %v397 = vadd.f32 %v313, %v396
      %v398 = vpop.f32.mrf.mxu0
      %v399 = vadd.f32 %v313, %v398
      %400 = vdwg.mxu0
      %v401 = vmax.f32 %v362, 0.0
      %v402 = vmax.f32 %v364, 0.0
      %v403 = vmax.f32 %v367, 0.0
      %v404 = vmax.f32 %v369, 0.0
      %v405 = vmax.f32 %v372, 0.0
      %v406 = vmax.f32 %v374, 0.0
      %v407 = vmax.f32 %v377, 0.0
      %v408 = vmax.f32 %v379, 0.0
      %v409 = vmax.f32 %v382, 0.0
      %v410 = vmax.f32 %v384, 0.0
      %v411 = vmax.f32 %v387, 0.0
      %v412 = vmax.f32 %v389, 0.0
      %v413 = vmax.f32 %v392, 0.0
      %v414 = vmax.f32 %v394, 0.0
      %v415 = vmax.f32 %v397, 0.0
      %v416 = vmax.f32 %v399, 0.0
      %v417 = vpack.c.bf16 %v402, %v401
      %v418 = vpack.c.bf16 %v404, %v403
      %v419 = vpack.c.bf16 %v406, %v405
      %v420 = vpack.c.bf16 %v408, %v407
      %v421 = vpack.c.bf16 %v410, %v409
      %v422 = vpack.c.bf16 %v412, %v411
      %v423 = vpack.c.bf16 %v414, %v413
      %v424 = vpack.c.bf16 %v416, %v415
      %v425 = vld [vmem:[%s3] sm:$0xf]
      %v426 = vld [vmem:[%s3 + $0x4] sm:$0xf]
      %v427 = vld [vmem:[%s3 + $0x8] sm:$0xf]
      %v428 = vld [vmem:[%s3 + $0xc] sm:$0xf]
      %v429 = vld [vmem:[%s3 + $0x10] sm:$0xf]
      %v430 = vld [vmem:[%s3 + $0x14] sm:$0xf]
      %v431 = vld [vmem:[%s3 + $0x18] sm:$0xf]
      %v432 = vld [vmem:[%s3 + $0x1c] sm:$0xf]
      %v433 = vld [vmem:[%s4] sm:$0x1]
      %v435 = vperm.slane %v433, 0
      %v445 = vunpack.c.l.b16 %v425
      %v446 = vunpack.c.l.b16 %v426
      %v447 = vunpack.c.l.b16 %v427
      %v448 = vunpack.c.l.b16 %v428
      %v449 = vunpack.c.l.b16 %v429
      %v450 = vunpack.c.l.b16 %v430
      %v451 = vunpack.c.l.b16 %v431
      %v452 = vunpack.c.l.b16 %v432
      %v453 = vpack.c.b16 %v446, %v445
      %v454 = vpack.c.b16 %v448, %v447
      %v455 = vpack.c.b16 %v450, %v449
      %v456 = vpack.c.b16 %v452, %v451
      %vm461 = vcmask 523264
      %v463 = vsel %vm461, %v417, 0
      %v466 = vsel %vm461, %v418, 0
      %v469 = vsel %vm461, %v419, 0
      %v472 = vsel %vm461, %v420, 0
      %v475 = vsel %vm461, %v421, 0
      %v478 = vsel %vm461, %v422, 0
      %v481 = vsel %vm461, %v423, 0
      %v484 = vsel %vm461, %v424, 0
      %486 = vmatpush.bf16.msra.mxu0 0
      %487 = vmatpush.bf16.msra.mxu0 0
      %488 = vmatpush.bf16.msra.mxu0 0
      %489 = vmatpush.bf16.msra.mxu0 0
      %490 = vmatpush.bf16.msra.mxu0 %v456
      %491 = vmatpush.bf16.msra.mxu0 %v455
      %492 = vmatpush.bf16.msra.mxu0 %v454
      %493 = vmatpush.bf16.msra.mxu0 %v453
      %494 = vmatmul.bf16.gmra.mxu0 %v463
      %v495 = vpop.f32.mrf.mxu0
      %v496 = vadd.f32 %v435, %v495
      %v497 = vpop.f32.mrf.mxu0
      %v498 = vadd.f32 %v435, %v497
      %499 = vmatmul.bf16.gmra.mxu0 %v466
      %v500 = vpop.f32.mrf.mxu0
      %v501 = vadd.f32 %v435, %v500
      %v502 = vpop.f32.mrf.mxu0
      %v503 = vadd.f32 %v435, %v502
      %504 = vmatmul.bf16.gmra.mxu0 %v469
      %v505 = vpop.f32.mrf.mxu0
      %v506 = vadd.f32 %v435, %v505
      %v507 = vpop.f32.mrf.mxu0
      %v508 = vadd.f32 %v435, %v507
      %509 = vmatmul.bf16.gmra.mxu0 %v472
      %v510 = vpop.f32.mrf.mxu0
      %v511 = vadd.f32 %v435, %v510
      %v512 = vpop.f32.mrf.mxu0
      %v513 = vadd.f32 %v435, %v512
      %514 = vmatmul.bf16.gmra.mxu0 %v475
      %v515 = vpop.f32.mrf.mxu0
      %v516 = vadd.f32 %v435, %v515
      %v517 = vpop.f32.mrf.mxu0
      %v518 = vadd.f32 %v435, %v517
      %519 = vmatmul.bf16.gmra.mxu0 %v478
      %v520 = vpop.f32.mrf.mxu0
      %v521 = vadd.f32 %v435, %v520
      %v522 = vpop.f32.mrf.mxu0
      %v523 = vadd.f32 %v435, %v522
      %524 = vmatmul.bf16.gmra.mxu0 %v481
      %v525 = vpop.f32.mrf.mxu0
      %v526 = vadd.f32 %v435, %v525
      %v527 = vpop.f32.mrf.mxu0
      %v528 = vadd.f32 %v435, %v527
      %529 = vmatmul.bf16.gmra.mxu0 %v484
      %v530 = vpop.f32.mrf.mxu0
      %v531 = vadd.f32 %v435, %v530
      %v532 = vpop.f32.mrf.mxu0
      %v533 = vadd.f32 %v435, %v532
      %534 = vdwg.mxu0
      %v535 = vmax.f32 %v496, 0.0
      %v536 = vmax.f32 %v498, 0.0
      %v537 = vmax.f32 %v501, 0.0
      %v538 = vmax.f32 %v503, 0.0
      %v539 = vmax.f32 %v506, 0.0
      %v540 = vmax.f32 %v508, 0.0
      %v541 = vmax.f32 %v511, 0.0
      %v542 = vmax.f32 %v513, 0.0
      %v543 = vmax.f32 %v516, 0.0
      %v544 = vmax.f32 %v518, 0.0
      %v545 = vmax.f32 %v521, 0.0
      %v546 = vmax.f32 %v523, 0.0
      %v547 = vmax.f32 %v526, 0.0
      %v548 = vmax.f32 %v528, 0.0
      %v549 = vmax.f32 %v531, 0.0
      %v550 = vmax.f32 %v533, 0.0
      %v551 = vpack.c.bf16 %v536, %v535
      %v552 = vpack.c.bf16 %v538, %v537
      %v553 = vpack.c.bf16 %v540, %v539
      %v554 = vpack.c.bf16 %v542, %v541
      %v555 = vpack.c.bf16 %v544, %v543
      %v556 = vpack.c.bf16 %v546, %v545
      %v557 = vpack.c.bf16 %v548, %v547
      %v558 = vpack.c.bf16 %v550, %v549
      %v559 = vld [vmem:[%s5] sm:$0xf]
      %v560 = vld [vmem:[%s5 + $0x4] sm:$0xf]
      %v561 = vld [vmem:[%s5 + $0x8] sm:$0xf]
      %v562 = vld [vmem:[%s5 + $0xc] sm:$0xf]
      %v563 = vld [vmem:[%s6] sm:$0x1]
      %v565 = vperm.slane %v563, 0
      %v571 = vunpack.c.l.b16 %v559
      %v572 = vunpack.c.l.b16 %v560
      %v573 = vunpack.c.l.b16 %v561
      %v574 = vunpack.c.l.b16 %v562
      %v575 = vpack.c.b16 %v572, %v571
      %v576 = vpack.c.b16 %v574, %v573
      %v580 = vsel %vm327, %v551, 0
      %v583 = vsel %vm327, %v552, 0
      %v586 = vsel %vm327, %v553, 0
      %v589 = vsel %vm327, %v554, 0
      %v592 = vsel %vm327, %v555, 0
      %v595 = vsel %vm327, %v556, 0
      %v598 = vsel %vm327, %v557, 0
      %v601 = vsel %vm327, %v558, 0
      %603 = vmatpush.bf16.msra.mxu0 0
      %604 = vmatpush.bf16.msra.mxu0 0
      %605 = vmatpush.bf16.msra.mxu0 0
      %606 = vmatpush.bf16.msra.mxu0 0
      %607 = vmatpush.bf16.msra.mxu0 0
      %608 = vmatpush.bf16.msra.mxu0 0
      %609 = vmatpush.bf16.msra.mxu0 %v576
      %610 = vmatpush.bf16.msra.mxu0 %v575
      %611 = vmatmul.bf16.gmra.mxu0 %v580
      %v612 = vpop.f32.mrf.mxu0
      %v613 = vadd.f32 %v565, %v612
      %v614 = vpop.f32.mrf.mxu0
      %v615 = vadd.f32 %v565, %v614
      %616 = vmatmul.bf16.gmra.mxu0 %v583
      %v617 = vpop.f32.mrf.mxu0
      %v618 = vadd.f32 %v565, %v617
      %v619 = vpop.f32.mrf.mxu0
      %v620 = vadd.f32 %v565, %v619
      %621 = vmatmul.bf16.gmra.mxu0 %v586
      %v622 = vpop.f32.mrf.mxu0
      %v623 = vadd.f32 %v565, %v622
      %v624 = vpop.f32.mrf.mxu0
      %v625 = vadd.f32 %v565, %v624
      %626 = vmatmul.bf16.gmra.mxu0 %v589
      %v627 = vpop.f32.mrf.mxu0
      %v628 = vadd.f32 %v565, %v627
      %v629 = vpop.f32.mrf.mxu0
      %v630 = vadd.f32 %v565, %v629
      %631 = vmatmul.bf16.gmra.mxu0 %v592
      %v632 = vpop.f32.mrf.mxu0
      %v633 = vadd.f32 %v565, %v632
      %v634 = vpop.f32.mrf.mxu0
      %v635 = vadd.f32 %v565, %v634
      %636 = vmatmul.bf16.gmra.mxu0 %v595
      %v637 = vpop.f32.mrf.mxu0
      %v638 = vadd.f32 %v565, %v637
      %v639 = vpop.f32.mrf.mxu0
      %v640 = vadd.f32 %v565, %v639
      %641 = vmatmul.bf16.gmra.mxu0 %v598
      %v642 = vpop.f32.mrf.mxu0
      %v643 = vadd.f32 %v565, %v642
      %v644 = vpop.f32.mrf.mxu0
      %v645 = vadd.f32 %v565, %v644
      %646 = vmatmul.bf16.gmra.mxu0 %v601
      %v647 = vpop.f32.mrf.mxu0
      %v648 = vadd.f32 %v565, %v647
      %v649 = vpop.f32.mrf.mxu0
      %v650 = vadd.f32 %v565, %v649
      %651 = vdwg.mxu0
      %vm652 = vcmask 31744
      %653 = vst.msk [vmem:[%s280] sm:$0xff] %vm652, %v613
      %654 = vst.msk [vmem:[%s280 + $0x8] sm:$0xff] %vm652, %v615
      %655 = vst.msk [vmem:[%s280 + $0x10] sm:$0xff] %vm652, %v618
      %656 = vst.msk [vmem:[%s280 + $0x18] sm:$0xff] %vm652, %v620
      %657 = vst.msk [vmem:[%s280 + $0x20] sm:$0xff] %vm652, %v623
      %658 = vst.msk [vmem:[%s280 + $0x28] sm:$0xff] %vm652, %v625
      %659 = vst.msk [vmem:[%s280 + $0x30] sm:$0xff] %vm652, %v628
      %660 = vst.msk [vmem:[%s280 + $0x38] sm:$0xff] %vm652, %v630
      %661 = vst.msk [vmem:[%s280 + $0x40] sm:$0xff] %vm652, %v633
      %662 = vst.msk [vmem:[%s280 + $0x48] sm:$0xff] %vm652, %v635
      %663 = vst.msk [vmem:[%s280 + $0x50] sm:$0xff] %vm652, %v638
      %664 = vst.msk [vmem:[%s280 + $0x58] sm:$0xff] %vm652, %v640
      %665 = vst.msk [vmem:[%s280 + $0x60] sm:$0xff] %vm652, %v643
      %666 = vst.msk [vmem:[%s280 + $0x68] sm:$0xff] %vm652, %v645
      %667 = vst.msk [vmem:[%s280 + $0x70] sm:$0xff] %vm652, %v648
      %668 = vst.msk [vmem:[%s280 + $0x78] sm:$0xff] %vm652, %v650
      %s669 = smul.u32 16, %s18
      %p670 = scmp.lt.s32.totalorder %s669, 31
      %s671 = scalar_select %p670, %s669, 31
      %s672 = smul.addr %s671, 8
      %s673 = scalar_lea.vmem %s7, %s672
      // Predicated region
      $region49: #{hacker_classifier_forward.1} parent=47 // pred_check
        %p674 = pneg %p188
      $region50: #{hacker_classifier_forward.1} parent=47 // pred_check_branch
        %676 = sbr.rel (%p674) target = $region52
      $region51: #{hacker_classifier_forward.1} parent=47 // pred_region
        %s677 = smul.u32 16, %s18
      $region52: #{hacker_classifier_forward.1} parent=47 // pred_fallthru
        _
    $region48: #{hacker_classifier_forward.1} parent=5 // pred_fallthru
      _
    %p678 = scmp.le.s32.totalorder 2, %s13
    // Predicated region
    $region53: #{hacker_classifier_forward.1} parent=5 // pred_check
      %p679 = pneg %p678
    $region54: #{hacker_classifier_forward.1} parent=5 // pred_check_branch
      %681 = sbr.rel (%p679) target = $region56
    $region55: #{hacker_classifier_forward.1} parent=5 // pred_region
      %s682 = ssub.s32 %s13, 2
      // Predicated region
      $region57: #{hacker_classifier_forward.1} parent=55 // pred_check
        %p683 = pneg %p194
      $region58: #{hacker_classifier_forward.1} parent=55 // pred_check_branch
        %685 = sbr.rel (%p683) target = $region60
      $region59: #{hacker_classifier_forward.1} parent=55 // pred_region
        %s686 = smul.u32 16, %s19
        %p687 = scmp.lt.s32.totalorder %s686, 31
        %s688 = scalar_select %p687, %s686, 31
        %s689 = smul.addr %s688, 8
        %s690 = scalar_lea.vmem %s7, %s689
      $region60: #{hacker_classifier_forward.1} parent=55 // pred_fallthru
        _
    $region56: #{hacker_classifier_forward.1} parent=5 // pred_fallthru
      _
  $region6: #{hacker_classifier_forward.1} parent=0 // loop_footer
    %s17 = sadd.s32 1, %s13
  $region7: #{hacker_classifier_forward.1} parent=0 // loop_footer_branch
    %12 = sbr.rel target = $region3
  $region8: #{hacker_classifier_forward.1} parent=0 // loop_exit
    _

</llo_original>
